<compile_context>
chip_gen: v5e
topology: v5e:2x2
jax: 0.10.0
libtpu: 0.0.40
codegen_flags: <defaults>
</compile_context>

<pallas_src>
import math
import jax
import jax.numpy as jnp
from jax.experimental import pallas as pl
from jax.experimental.pallas import tpu as pltpu

D_MODEL = 32
VOCAB_SIZE = 256


def scaled_embedding_kernel(ids_ref, table_ref, out_ref):
    ids = ids_ref[...]                      # (B*S, 1) int32 token ids
    table = table_ref[...]                  # (V, D)   f32 embedding table
    bs = ids.shape[0]
    v = table.shape[0]

    # One-hot gather on the MXU: rows of `onehot` select rows of `table`.
    lane_ids = jax.lax.broadcasted_iota(jnp.int32, (bs, v), 1)
    onehot = (lane_ids == ids).astype(table.dtype)          # (B*S, V)
    emb = jnp.dot(
        onehot, table,
        preferred_element_type=jnp.float32,
        precision=jax.lax.Precision.HIGHEST,                # exact f32 gather
    )                                                        # (B*S, D)

    out_ref[...] = (emb * jnp.float32(math.sqrt(D_MODEL))).astype(out_ref.dtype)


def scaled_embedding(ids, table):
    """ids: (B, S) int32 token ids; table: (V, D) f32. Returns (B, S, D)."""
    B, S = ids.shape
    V, D = table.shape
    bs = B * S
    ids2 = ids.reshape(bs, 1).astype(jnp.int32)

    out = pl.pallas_call(
        scaled_embedding_kernel,
        out_shape=jax.ShapeDtypeStruct((bs, D), table.dtype),
        grid=(1,),
        in_specs=[
            pl.BlockSpec((bs, 1), lambda i: (0, 0)),   # token ids (full array)
            pl.BlockSpec((V, D), lambda i: (0, 0)),    # embedding table (full)
        ],
        out_specs=pl.BlockSpec((bs, D), lambda i: (0, 0)),
        compiler_params=pltpu.CompilerParams(
            dimension_semantics=("arbitrary",)),
    )(ids2, table)

    return out.reshape(B, S, D)


if __name__ == "__main__":
    key = jax.random.PRNGKey(0)
    kids, ktab = jax.random.split(key)

    B, S = 2, 8
    ids = jax.random.randint(kids, (B, S), 0, VOCAB_SIZE, dtype=jnp.int32)
    table = 0.02 * jax.random.normal(ktab, (VOCAB_SIZE, D_MODEL), jnp.float32)

    out = scaled_embedding(ids, table)
    out = jax.block_until_ready(out)

    assert out.shape == (B, S, D_MODEL) and out.dtype == jnp.float32
    assert bool(jnp.all(jnp.isfinite(out)))

    # Pure-JAX reference: embedding lookup * sqrt(d_model).
    ref = jnp.take(table, ids, axis=0) * math.sqrt(D_MODEL)
    max_err = float(jnp.max(jnp.abs(out - ref)))
    assert max_err < 1e-4, f"kernel mismatch vs reference: {max_err}"

    print("KERNEL_OK")
</pallas_src>

<mosaic_0001>
module attributes {stable_mosaic.version = 11 : i64} {
  func.func @scaled_embedding_kernel(%arg0: i32, %arg1: memref<16x1xi32, #tpu.memory_space<vmem>>, %arg2: memref<256x32xf32, #tpu.memory_space<vmem>>, %arg3: memref<16x32xf32, #tpu.memory_space<vmem>>) attributes {dimension_semantics = [#tpu.dimension_semantics<arbitrary>], iteration_bounds = array<i64: 1>, scalar_prefetch = 0 : i64, scratch_operands = 0 : i64, tpu.core_type = #tpu.core_type<tc>, window_params = [{pipeline_mode = #tpu.pipeline_mode<synchronous>, transform_indices = @transform_0, window_bounds = array<i64: 16, 1>}, {pipeline_mode = #tpu.pipeline_mode<synchronous>, transform_indices = @transform_1, window_bounds = array<i64: 256, 32>}, {pipeline_mode = #tpu.pipeline_mode<synchronous>, transform_indices = @transform_2, window_bounds = array<i64: 16, 32>}]} {
    %c0 = arith.constant 0 : index
    %c0_0 = arith.constant 0 : index
    %0 = vector.load %arg1[%c0, %c0_0] : memref<16x1xi32, #tpu.memory_space<vmem>>, vector<16x1xi32>
    %c0_1 = arith.constant 0 : index
    %c0_2 = arith.constant 0 : index
    %1 = vector.load %arg2[%c0_1, %c0_2] : memref<256x32xf32, #tpu.memory_space<vmem>>, vector<256x32xf32>
    %2 = tpu.iota {dimensions = array<i32: 1>} : vector<16x256xi32>
    %3 = vector.broadcast %0 : vector<16x1xi32> to vector<16x256xi32>
    %4 = arith.cmpi eq, %2, %3 : vector<16x256xi32>
    %5 = arith.extui %4 : vector<16x256xi1> to vector<16x256xi32>
    %6 = arith.sitofp %5 : vector<16x256xi32> to vector<16x256xf32>
    %cst = arith.constant dense<0.000000e+00> : vector<16x32xf32>
    %7 = tpu.matmul %6, %1, %cst {dimension_numbers = #tpu.dot_dimension_numbers<[1], [0], [0], [1], [0, 0, 1, 1], [], []>, precision = #tpu.contract_precision<fp32>} : vector<16x256xf32>, vector<256x32xf32>, vector<16x32xf32> -> vector<16x32xf32>
    %cst_3 = arith.constant 5.65685415 : f32
    %8 = vector.broadcast %cst_3 : f32 to vector<16x32xf32>
    %9 = arith.mulf %7, %8 : vector<16x32xf32>
    %c0_4 = arith.constant 0 : index
    %c0_5 = arith.constant 0 : index
    %10 = vector.load %arg3[%c0_4, %c0_5] : memref<16x32xf32, #tpu.memory_space<vmem>>, vector<16x32xf32>
    tpu.vector_store %arg3[%c0_4, %c0_5], %9 {strides = array<i32>} : memref<16x32xf32, #tpu.memory_space<vmem>>, vector<16x32xf32>,
    return
  }
  func.func @transform_0(%arg0: i32) -> (i32, i32) {
    %c0_i32 = arith.constant 0 : i32
    %c0_i32_0 = arith.constant 0 : i32
    %c0_i32_1 = arith.constant 0 : i32
    return %c0_i32, %c0_i32_0 : i32, i32
  }
  func.func @transform_1(%arg0: i32) -> (i32, i32) {
    %c0_i32 = arith.constant 0 : i32
    %c0_i32_0 = arith.constant 0 : i32
    %c0_i32_1 = arith.constant 0 : i32
    return %c0_i32, %c0_i32_0 : i32, i32
  }
  func.func @transform_2(%arg0: i32) -> (i32, i32) {
    %c0_i32 = arith.constant 0 : i32
    %c0_i32_0 = arith.constant 0 : i32
    %c0_i32_1 = arith.constant 0 : i32
    return %c0_i32, %c0_i32_0 : i32, i32
  }
}

</mosaic_0001>

<llo_original>
// kernel: tpu_custom_call.1
$region0: #{tpu_custom_call.1}
  #allocation0 [shape = 'u32[]', space=smem, size = 0x4, offset = 0x4, fixed_abs, tag = 'smem constant byte address 0x4 - core index']
  #allocation1 [shape = 'u32[72,128]{1,0:T(1,128)}', space=vmem, size = 0x9000, scoped, tag = 'internal scratch']
  %s0 = inlined_call_operand.vmem [shape: s32[16,1], index: 0, kind: input, shape index: {}]
  %s1 = inlined_call_operand.vmem [shape: f32[256,32], index: 1, kind: input, shape index: {}]
  %s2 = inlined_call_operand.hbm [shape: f32[16,32], index: 2, kind: output, shape index: {}]
  %s3 = sld [smem:[#allocation0]]
  $region18: #{tpu_custom_call.1} parent=0
    _
  %s5 = ssub.s32 1, %s3
  %s6 = scalar_select 0, %s5, %s3
  $region1: #{tpu_custom_call.1} parent=0
    #allocation2 [shape = 'u8[8192]{0}', space=vmem, size = 0x2000, scoped, tag = 'output window, operand 0, single buffered']
    #allocation3 [shape = 's32[1]{0}', space=sflag, size = 0x4, scoped, tag = 'scoped memory for tpu_custom_call.1']
    %7 = vsyncpa [#allocation3], 0
    // Predicated region
    $region2: #{tpu_custom_call.1} parent=1 // pred_check
      _
    $region3: #{tpu_custom_call.1} parent=1 // pred_check_branch
      %9 = sbr.rel (0) target = $region5
    $region4: #{tpu_custom_call.1} parent=1 // pred_region
      _
    $region5: #{tpu_custom_call.1} parent=1 // pred_fallthru
      _
    // Predicated region
    $region6: #{tpu_custom_call.1} parent=1 // pred_check
      _
    $region7: #{tpu_custom_call.1} parent=1 // pred_check_branch
      %11 = sbr.rel (0) target = $region9
    $region8: #{tpu_custom_call.1} parent=1 // pred_region
      _
    $region9: #{tpu_custom_call.1} parent=1 // pred_fallthru
      _
    %v12 = vld [vmem:[%s0] sm:$0xff]
    %v13 = vld [vmem:[%s0 + $0x8] sm:$0xff]
    %v14 = vld [vmem:[%s1] sm:$0xff]
    %v15 = vld [vmem:[%s1 + $0x8] sm:$0xff]
    %v16 = vld [vmem:[%s1 + $0x10] sm:$0xff]
    %v17 = vld [vmem:[%s1 + $0x18] sm:$0xff]
    %v18 = vld [vmem:[%s1 + $0x20] sm:$0xff]
    %v19 = vld [vmem:[%s1 + $0x28] sm:$0xff]
    %v20 = vld [vmem:[%s1 + $0x30] sm:$0xff]
    %v21 = vld [vmem:[%s1 + $0x38] sm:$0xff]
    %v22 = vld [vmem:[%s1 + $0x40] sm:$0xff]
    %v23 = vld [vmem:[%s1 + $0x48] sm:$0xff]
    %v24 = vld [vmem:[%s1 + $0x50] sm:$0xff]
    %v25 = vld [vmem:[%s1 + $0x58] sm:$0xff]
    %v26 = vld [vmem:[%s1 + $0x60] sm:$0xff]
    %v27 = vld [vmem:[%s1 + $0x68] sm:$0xff]
    %v28 = vld [vmem:[%s1 + $0x70] sm:$0xff]
    %v29 = vld [vmem:[%s1 + $0x78] sm:$0xff]
    %v30 = vld [vmem:[%s1 + $0x80] sm:$0xff]
    %v31 = vld [vmem:[%s1 + $0x88] sm:$0xff]
    %v32 = vld [vmem:[%s1 + $0x90] sm:$0xff]
    %v33 = vld [vmem:[%s1 + $0x98] sm:$0xff]
    %v34 = vld [vmem:[%s1 + $0xa0] sm:$0xff]
    %v35 = vld [vmem:[%s1 + $0xa8] sm:$0xff]
    %v36 = vld [vmem:[%s1 + $0xb0] sm:$0xff]
    %v37 = vld [vmem:[%s1 + $0xb8] sm:$0xff]
    %v38 = vld [vmem:[%s1 + $0xc0] sm:$0xff]
    %v39 = vld [vmem:[%s1 + $0xc8] sm:$0xff]
    %v40 = vld [vmem:[%s1 + $0xd0] sm:$0xff]
    %v41 = vld [vmem:[%s1 + $0xd8] sm:$0xff]
    %v42 = vld [vmem:[%s1 + $0xe0] sm:$0xff]
    %v43 = vld [vmem:[%s1 + $0xe8] sm:$0xff]
    %v44 = vld [vmem:[%s1 + $0xf0] sm:$0xff]
    %v45 = vld [vmem:[%s1 + $0xf8] sm:$0xff]
    %v46 = vlaneseq
    %v47 = vand.u32 %v46, 127
    %v48 = vadd.s32 %v47, 128
    %49 = vset.pattern.permute.xlu0 0
    %50 = vperm.xlu0 %49, %v12
    %v51 = vpop.permute.xlu0 %50
    %52 = vset.pattern.permute.xlu0 0
    %53 = vperm.xlu0 %52, %v13
    %v54 = vpop.permute.xlu0 %53
    %vm55 = vcmp.eq.s32.totalorder %v47, %v51
    %vm56 = vcmp.eq.s32.totalorder %v48, %v51
    %vm57 = vcmp.eq.s32.totalorder %v47, %v54
    %vm58 = vcmp.eq.s32.totalorder %v48, %v54
    %v59 = vsel %vm55, 1, 0
    %v60 = vsel %vm56, 1, 0
    %v61 = vsel %vm57, 1, 0
    %v62 = vsel %vm58, 1, 0
    %v63 = vcvt.s32.f32 %v59
    %v64 = vcvt.s32.f32 %v60
    %v65 = vcvt.s32.f32 %v61
    %v66 = vcvt.s32.f32 %v62
    %v67 = vand.u32 %v29, 4294901760
    %68 = vmatpush.msra.mxu0 %v67
    %v69 = vand.u32 %v28, 4294901760
    %70 = vmatpush.msra.mxu0 %v69
    %v71 = vand.u32 %v27, 4294901760
    %72 = vmatpush.msra.mxu0 %v71
    %v73 = vand.u32 %v26, 4294901760
    %74 = vmatpush.msra.mxu0 %v73
    %v75 = vand.u32 %v25, 4294901760
    %76 = vmatpush.msra.mxu0 %v75
    %v77 = vand.u32 %v24, 4294901760
    %78 = vmatpush.msra.mxu0 %v77
    %v79 = vand.u32 %v23, 4294901760
    %80 = vmatpush.msra.mxu0 %v79
    %v81 = vand.u32 %v22, 4294901760
    %82 = vmatpush.msra.mxu0 %v81
    %v83 = vand.u32 %v21, 4294901760
    %84 = vmatpush.msra.mxu0 %v83
    %v85 = vand.u32 %v20, 4294901760
    %86 = vmatpush.msra.mxu0 %v85
    %v87 = vand.u32 %v19, 4294901760
    %88 = vmatpush.msra.mxu0 %v87
    %v89 = vand.u32 %v18, 4294901760
    %90 = vmatpush.msra.mxu0 %v89
    %v91 = vand.u32 %v17, 4294901760
    %92 = vmatpush.msra.mxu0 %v91
    %v93 = vand.u32 %v16, 4294901760
    %94 = vmatpush.msra.mxu0 %v93
    %v95 = vand.u32 %v15, 4294901760
    %96 = vmatpush.msra.mxu0 %v95
    %v97 = vand.u32 %v14, 4294901760
    %98 = vmatpush.msra.mxu0 %v97
    %v99 = vand.u32 %v63, 4294901760
    %v100 = vsub.f32 %v63, %v99
    %v101 = vand.u32 %v100, 4294901760
    %v102 = vsub.f32 %v100, %v101
    %v103 = vand.u32 %v102, 4294901760
    %104 = vmatmul.f32.gmra.mxu0 %v103
    %v105 = vpop.f32.mrf.mxu0
    %v106 = vadd.f32 0.0, %v105
    %v107 = vand.u32 %v65, 4294901760
    %v108 = vsub.f32 %v65, %v107
    %v109 = vand.u32 %v108, 4294901760
    %v110 = vsub.f32 %v108, %v109
    %v111 = vand.u32 %v110, 4294901760
    %112 = vmatmul.f32.gmra.mxu0 %v111
    %v113 = vpop.f32.mrf.mxu0
    %v114 = vadd.f32 0.0, %v113
    %115 = vdwg.mxu0
    %v116 = vand.u32 %v29, 4294901760
    %v117 = vsub.f32 %v29, %v116
    %v118 = vand.u32 %v117, 4294901760
    %v119 = vsub.f32 %v117, %v118
    %v120 = vand.u32 %v119, 4294901760
    %121 = vmatpush.msra.mxu0 %v120
    %v122 = vand.u32 %v28, 4294901760
    %v123 = vsub.f32 %v28, %v122
    %v124 = vand.u32 %v123, 4294901760
    %v125 = vsub.f32 %v123, %v124
    %v126 = vand.u32 %v125, 4294901760
    %127 = vmatpush.msra.mxu0 %v126
    %v128 = vand.u32 %v27, 4294901760
    %v129 = vsub.f32 %v27, %v128
    %v130 = vand.u32 %v129, 4294901760
    %v131 = vsub.f32 %v129, %v130
    %v132 = vand.u32 %v131, 4294901760
    %133 = vmatpush.msra.mxu0 %v132
    %v134 = vand.u32 %v26, 4294901760
    %v135 = vsub.f32 %v26, %v134
    %v136 = vand.u32 %v135, 4294901760
    %v137 = vsub.f32 %v135, %v136
    %v138 = vand.u32 %v137, 4294901760
    %139 = vmatpush.msra.mxu0 %v138
    %v140 = vand.u32 %v25, 4294901760
    %v141 = vsub.f32 %v25, %v140
    %v142 = vand.u32 %v141, 4294901760
    %v143 = vsub.f32 %v141, %v142
    %v144 = vand.u32 %v143, 4294901760
    %145 = vmatpush.msra.mxu0 %v144
    %v146 = vand.u32 %v24, 4294901760
    %v147 = vsub.f32 %v24, %v146
    %v148 = vand.u32 %v147, 4294901760
    %v149 = vsub.f32 %v147, %v148
    %v150 = vand.u32 %v149, 4294901760
    %151 = vmatpush.msra.mxu0 %v150
    %v152 = vand.u32 %v23, 4294901760
    %v153 = vsub.f32 %v23, %v152
    %v154 = vand.u32 %v153, 4294901760
    %v155 = vsub.f32 %v153, %v154
    %v156 = vand.u32 %v155, 4294901760
    %157 = vmatpush.msra.mxu0 %v156
    %v158 = vand.u32 %v22, 4294901760
    %v159 = vsub.f32 %v22, %v158
    %v160 = vand.u32 %v159, 4294901760
    %v161 = vsub.f32 %v159, %v160
    %v162 = vand.u32 %v161, 4294901760
    %163 = vmatpush.msra.mxu0 %v162
    %v164 = vand.u32 %v21, 4294901760
    %v165 = vsub.f32 %v21, %v164
    %v166 = vand.u32 %v165, 4294901760
    %v167 = vsub.f32 %v165, %v166
    %v168 = vand.u32 %v167, 4294901760
    %169 = vmatpush.msra.mxu0 %v168
    %v170 = vand.u32 %v20, 4294901760
    %v171 = vsub.f32 %v20, %v170
    %v172 = vand.u32 %v171, 4294901760
    %v173 = vsub.f32 %v171, %v172
    %v174 = vand.u32 %v173, 4294901760
    %175 = vmatpush.msra.mxu0 %v174
    %v176 = vand.u32 %v19, 4294901760
    %v177 = vsub.f32 %v19, %v176
    %v178 = vand.u32 %v177, 4294901760
    %v179 = vsub.f32 %v177, %v178
    %v180 = vand.u32 %v179, 4294901760
    %181 = vmatpush.msra.mxu0 %v180
    %v182 = vand.u32 %v18, 4294901760
    %v183 = vsub.f32 %v18, %v182
    %v184 = vand.u32 %v183, 4294901760
    %v185 = vsub.f32 %v183, %v184
    %v186 = vand.u32 %v185, 4294901760
    %187 = vmatpush.msra.mxu0 %v186
    %v188 = vand.u32 %v17, 4294901760
    %v189 = vsub.f32 %v17, %v188
    %v190 = vand.u32 %v189, 4294901760
    %v191 = vsub.f32 %v189, %v190
    %v192 = vand.u32 %v191, 4294901760
    %193 = vmatpush.msra.mxu0 %v192
    %v194 = vand.u32 %v16, 4294901760
    %v195 = vsub.f32 %v16, %v194
    %v196 = vand.u32 %v195, 4294901760
    %v197 = vsub.f32 %v195, %v196
    %v198 = vand.u32 %v197, 4294901760
    %199 = vmatpush.msra.mxu0 %v198
    %v200 = vand.u32 %v15, 4294901760
    %v201 = vsub.f32 %v15, %v200
    %v202 = vand.u32 %v201, 4294901760
    %v203 = vsub.f32 %v201, %v202
    %v204 = vand.u32 %v203, 4294901760
    %205 = vmatpush.msra.mxu0 %v204
    %v206 = vand.u32 %v14, 4294901760
    %v207 = vsub.f32 %v14, %v206
    %v208 = vand.u32 %v207, 4294901760
    %v209 = vsub.f32 %v207, %v208
    %v210 = vand.u32 %v209, 4294901760
    %211 = vmatpush.msra.mxu0 %v210
    %v212 = vand.u32 %v63, 4294901760
    %213 = vmatmul.f32.gmra.mxu0 %v212
    %v214 = vpop.f32.mrf.mxu0
    %v215 = vadd.f32 %v106, %v214
    %v216 = vand.u32 %v65, 4294901760
    %217 = vmatmul.f32.gmra.mxu0 %v216
    %v218 = vpop.f32.mrf.mxu0
    %v219 = vadd.f32 %v114, %v218
    %220 = vdwg.mxu0
    %v221 = vand.u32 %v29, 4294901760
    %v222 = vsub.f32 %v29, %v221
    %223 = vmatpush.msra.mxu0 %v222
    %v224 = vand.u32 %v28, 4294901760
    %v225 = vsub.f32 %v28, %v224
    %226 = vmatpush.msra.mxu0 %v225
    %v227 = vand.u32 %v27, 4294901760
    %v228 = vsub.f32 %v27, %v227
    %229 = vmatpush.msra.mxu0 %v228
    %v230 = vand.u32 %v26, 4294901760
    %v231 = vsub.f32 %v26, %v230
    %232 = vmatpush.msra.mxu0 %v231
    %v233 = vand.u32 %v25, 4294901760
    %v234 = vsub.f32 %v25, %v233
    %235 = vmatpush.msra.mxu0 %v234
    %v236 = vand.u32 %v24, 4294901760
    %v237 = vsub.f32 %v24, %v236
    %238 = vmatpush.msra.mxu0 %v237
    %v239 = vand.u32 %v23, 4294901760
    %v240 = vsub.f32 %v23, %v239
    %241 = vmatpush.msra.mxu0 %v240
    %v242 = vand.u32 %v22, 4294901760
    %v243 = vsub.f32 %v22, %v242
    %244 = vmatpush.msra.mxu0 %v243
    %v245 = vand.u32 %v21, 4294901760
    %v246 = vsub.f32 %v21, %v245
    %247 = vmatpush.msra.mxu0 %v246
    %v248 = vand.u32 %v20, 4294901760
    %v249 = vsub.f32 %v20, %v248
    %250 = vmatpush.msra.mxu0 %v249
    %v251 = vand.u32 %v19, 4294901760
    %v252 = vsub.f32 %v19, %v251
    %253 = vmatpush.msra.mxu0 %v252
    %v254 = vand.u32 %v18, 4294901760
    %v255 = vsub.f32 %v18, %v254
    %256 = vmatpush.msra.mxu0 %v255
    %v257 = vand.u32 %v17, 4294901760
    %v258 = vsub.f32 %v17, %v257
    %259 = vmatpush.msra.mxu0 %v258
    %v260 = vand.u32 %v16, 4294901760
    %v261 = vsub.f32 %v16, %v260
    %262 = vmatpush.msra.mxu0 %v261
    %v263 = vand.u32 %v15, 4294901760
    %v264 = vsub.f32 %v15, %v263
    %265 = vmatpush.msra.mxu0 %v264
    %v266 = vand.u32 %v14, 4294901760
    %v267 = vsub.f32 %v14, %v266
    %268 = vmatpush.msra.mxu0 %v267
    %v269 = vand.u32 %v63, 4294901760
    %v270 = vsub.f32 %v63, %v269
    %271 = vmatmul.f32.gmra.mxu0 %v270
    %v272 = vpop.f32.mrf.mxu0
    %v273 = vadd.f32 %v215, %v272
    %v274 = vand.u32 %v65, 4294901760
    %v275 = vsub.f32 %v65, %v274
    %276 = vmatmul.f32.gmra.mxu0 %v275
    %v277 = vpop.f32.mrf.mxu0
    %v278 = vadd.f32 %v219, %v277
    %279 = vdwg.mxu0
    %v280 = vand.u32 %v29, 4294901760
    %281 = vmatpush.msra.mxu0 %v280
    %v282 = vand.u32 %v28, 4294901760
    %283 = vmatpush.msra.mxu0 %v282
    %v284 = vand.u32 %v27, 4294901760
    %285 = vmatpush.msra.mxu0 %v284
    %v286 = vand.u32 %v26, 4294901760
    %287 = vmatpush.msra.mxu0 %v286
    %v288 = vand.u32 %v25, 4294901760
    %289 = vmatpush.msra.mxu0 %v288
    %v290 = vand.u32 %v24, 4294901760
    %291 = vmatpush.msra.mxu0 %v290
    %v292 = vand.u32 %v23, 4294901760
    %293 = vmatpush.msra.mxu0 %v292
    %v294 = vand.u32 %v22, 4294901760
    %295 = vmatpush.msra.mxu0 %v294
    %v296 = vand.u32 %v21, 4294901760
    %297 = vmatpush.msra.mxu0 %v296
    %v298 = vand.u32 %v20, 4294901760
    %299 = vmatpush.msra.mxu0 %v298
    %v300 = vand.u32 %v19, 4294901760
    %301 = vmatpush.msra.mxu0 %v300
    %v302 = vand.u32 %v18, 4294901760
    %303 = vmatpush.msra.mxu0 %v302
    %v304 = vand.u32 %v17, 4294901760
    %305 = vmatpush.msra.mxu0 %v304
    %v306 = vand.u32 %v16, 4294901760
    %307 = vmatpush.msra.mxu0 %v306
    %v308 = vand.u32 %v15, 4294901760
    %309 = vmatpush.msra.mxu0 %v308
    %v310 = vand.u32 %v14, 4294901760
    %311 = vmatpush.msra.mxu0 %v310
    %v312 = vand.u32 %v63, 4294901760
    %v313 = vsub.f32 %v63, %v312
    %v314 = vand.u32 %v313, 4294901760
    %315 = vmatmul.f32.gmra.mxu0 %v314
    %v316 = vpop.f32.mrf.mxu0
    %v317 = vadd.f32 %v273, %v316
    %v318 = vand.u32 %v65, 4294901760
    %v319 = vsub.f32 %v65, %v318
    %v320 = vand.u32 %v319, 4294901760
    %321 = vmatmul.f32.gmra.mxu0 %v320
    %v322 = vpop.f32.mrf.mxu0
    %v323 = vadd.f32 %v278, %v322
    %324 = vdwg.mxu0
    %v325 = vand.u32 %v29, 4294901760
    %v326 = vsub.f32 %v29, %v325
    %v327 = vand.u32 %v326, 4294901760
    %328 = vmatpush.msra.mxu0 %v327
    %v329 = vand.u32 %v28, 4294901760
    %v330 = vsub.f32 %v28, %v329
    %v331 = vand.u32 %v330, 4294901760
    %332 = vmatpush.msra.mxu0 %v331
    %v333 = vand.u32 %v27, 4294901760
    %v334 = vsub.f32 %v27, %v333
    %v335 = vand.u32 %v334, 4294901760
    %336 = vmatpush.msra.mxu0 %v335
    %v337 = vand.u32 %v26, 4294901760
    %v338 = vsub.f32 %v26, %v337
    %v339 = vand.u32 %v338, 4294901760
    %340 = vmatpush.msra.mxu0 %v339
    %v341 = vand.u32 %v25, 4294901760
    %v342 = vsub.f32 %v25, %v341
    %v343 = vand.u32 %v342, 4294901760
    %344 = vmatpush.msra.mxu0 %v343
    %v345 = vand.u32 %v24, 4294901760
    %v346 = vsub.f32 %v24, %v345
    %v347 = vand.u32 %v346, 4294901760
    %348 = vmatpush.msra.mxu0 %v347
    %v349 = vand.u32 %v23, 4294901760
    %v350 = vsub.f32 %v23, %v349
    %v351 = vand.u32 %v350, 4294901760
    %352 = vmatpush.msra.mxu0 %v351
    %v353 = vand.u32 %v22, 4294901760
    %v354 = vsub.f32 %v22, %v353
    %v355 = vand.u32 %v354, 4294901760
    %356 = vmatpush.msra.mxu0 %v355
    %v357 = vand.u32 %v21, 4294901760
    %v358 = vsub.f32 %v21, %v357
    %v359 = vand.u32 %v358, 4294901760
    %360 = vmatpush.msra.mxu0 %v359
    %v361 = vand.u32 %v20, 4294901760
    %v362 = vsub.f32 %v20, %v361
    %v363 = vand.u32 %v362, 4294901760
    %364 = vmatpush.msra.mxu0 %v363
    %v365 = vand.u32 %v19, 4294901760
    %v366 = vsub.f32 %v19, %v365
    %v367 = vand.u32 %v366, 4294901760
    %368 = vmatpush.msra.mxu0 %v367
    %v369 = vand.u32 %v18, 4294901760
    %v370 = vsub.f32 %v18, %v369
    %v371 = vand.u32 %v370, 4294901760
    %372 = vmatpush.msra.mxu0 %v371
    %v373 = vand.u32 %v17, 4294901760
    %v374 = vsub.f32 %v17, %v373
    %v375 = vand.u32 %v374, 4294901760
    %376 = vmatpush.msra.mxu0 %v375
    %v377 = vand.u32 %v16, 4294901760
    %v378 = vsub.f32 %v16, %v377
    %v379 = vand.u32 %v378, 4294901760
    %380 = vmatpush.msra.mxu0 %v379
    %v381 = vand.u32 %v15, 4294901760
    %v382 = vsub.f32 %v15, %v381
    %v383 = vand.u32 %v382, 4294901760
    %384 = vmatpush.msra.mxu0 %v383
    %v385 = vand.u32 %v14, 4294901760
    %v386 = vsub.f32 %v14, %v385
    %v387 = vand.u32 %v386, 4294901760
    %388 = vmatpush.msra.mxu0 %v387
    %v389 = vand.u32 %v63, 4294901760
    %390 = vmatmul.f32.gmra.mxu0 %v389
    %v391 = vpop.f32.mrf.mxu0
    %v392 = vadd.f32 %v317, %v391
    %v393 = vand.u32 %v65, 4294901760
    %394 = vmatmul.f32.gmra.mxu0 %v393
    %v395 = vpop.f32.mrf.mxu0
    %v396 = vadd.f32 %v323, %v395
    %397 = vdwg.mxu0
    %v398 = vand.u32 %v29, 4294901760
    %399 = vmatpush.msra.mxu0 %v398
    %v400 = vand.u32 %v28, 4294901760
    %401 = vmatpush.msra.mxu0 %v400
    %v402 = vand.u32 %v27, 4294901760
    %403 = vmatpush.msra.mxu0 %v402
    %v404 = vand.u32 %v26, 4294901760
    %405 = vmatpush.msra.mxu0 %v404
    %v406 = vand.u32 %v25, 4294901760
    %407 = vmatpush.msra.mxu0 %v406
    %v408 = vand.u32 %v24, 4294901760
    %409 = vmatpush.msra.mxu0 %v408
    %v410 = vand.u32 %v23, 4294901760
    %411 = vmatpush.msra.mxu0 %v410
    %v412 = vand.u32 %v22, 4294901760
    %413 = vmatpush.msra.mxu0 %v412
    %v414 = vand.u32 %v21, 4294901760
    %415 = vmatpush.msra.mxu0 %v414
    %v416 = vand.u32 %v20, 4294901760
    %417 = vmatpush.msra.mxu0 %v416
    %v418 = vand.u32 %v19, 4294901760
    %419 = vmatpush.msra.mxu0 %v418
    %v420 = vand.u32 %v18, 4294901760
    %421 = vmatpush.msra.mxu0 %v420
    %v422 = vand.u32 %v17, 4294901760
    %423 = vmatpush.msra.mxu0 %v422
    %v424 = vand.u32 %v16, 4294901760
    %425 = vmatpush.msra.mxu0 %v424
    %v426 = vand.u32 %v15, 4294901760
    %427 = vmatpush.msra.mxu0 %v426
    %v428 = vand.u32 %v14, 4294901760
    %429 = vmatpush.msra.mxu0 %v428
    %v430 = vand.u32 %v63, 4294901760
    %431 = vmatmul.f32.gmra.mxu0 %v430
    %v432 = vpop.f32.mrf.mxu0
    %v433 = vadd.f32 %v392, %v432
    %v434 = vand.u32 %v65, 4294901760
    %435 = vmatmul.f32.gmra.mxu0 %v434
    %v436 = vpop.f32.mrf.mxu0
    %v437 = vadd.f32 %v396, %v436
    %438 = vdwg.mxu0
    %v439 = vand.u32 %v45, 4294901760
    %440 = vmatpush.msra.mxu0 %v439
    %v441 = vand.u32 %v44, 4294901760
    %442 = vmatpush.msra.mxu0 %v441
    %v443 = vand.u32 %v43, 4294901760
    %444 = vmatpush.msra.mxu0 %v443
    %v445 = vand.u32 %v42, 4294901760
    %446 = vmatpush.msra.mxu0 %v445
    %v447 = vand.u32 %v41, 4294901760
    %448 = vmatpush.msra.mxu0 %v447
    %v449 = vand.u32 %v40, 4294901760
    %450 = vmatpush.msra.mxu0 %v449
    %v451 = vand.u32 %v39, 4294901760
    %452 = vmatpush.msra.mxu0 %v451
    %v453 = vand.u32 %v38, 4294901760
    %454 = vmatpush.msra.mxu0 %v453
    %v455 = vand.u32 %v37, 4294901760
    %456 = vmatpush.msra.mxu0 %v455
    %v457 = vand.u32 %v36, 4294901760
    %458 = vmatpush.msra.mxu0 %v457
    %v459 = vand.u32 %v35, 4294901760
    %460 = vmatpush.msra.mxu0 %v459
    %v461 = vand.u32 %v34, 4294901760
    %462 = vmatpush.msra.mxu0 %v461
    %v463 = vand.u32 %v33, 4294901760
    %464 = vmatpush.msra.mxu0 %v463
    %v465 = vand.u32 %v32, 4294901760
    %466 = vmatpush.msra.mxu0 %v465
    %v467 = vand.u32 %v31, 4294901760
    %468 = vmatpush.msra.mxu0 %v467
    %v469 = vand.u32 %v30, 4294901760
    %470 = vmatpush.msra.mxu0 %v469
    %v471 = vand.u32 %v64, 4294901760
    %v472 = vsub.f32 %v64, %v471
    %v473 = vand.u32 %v472, 4294901760
    %v474 = vsub.f32 %v472, %v473
    %v475 = vand.u32 %v474, 4294901760
    %476 = vmatmul.f32.gmra.mxu0 %v475
    %v477 = vpop.f32.mrf.mxu0
    %v478 = vadd.f32 %v433, %v477
    %v479 = vand.u32 %v66, 4294901760
    %v480 = vsub.f32 %v66, %v479
    %v481 = vand.u32 %v480, 4294901760
    %v482 = vsub.f32 %v480, %v481
    %v483 = vand.u32 %v482, 4294901760
    %484 = vmatmul.f32.gmra.mxu0 %v483
    %v485 = vpop.f32.mrf.mxu0
    %v486 = vadd.f32 %v437, %v485
    %487 = vdwg.mxu0
    %v488 = vand.u32 %v45, 4294901760
    %v489 = vsub.f32 %v45, %v488
    %v490 = vand.u32 %v489, 4294901760
    %v491 = vsub.f32 %v489, %v490
    %v492 = vand.u32 %v491, 4294901760
    %493 = vmatpush.msra.mxu0 %v492
    %v494 = vand.u32 %v44, 4294901760
    %v495 = vsub.f32 %v44, %v494
    %v496 = vand.u32 %v495, 4294901760
    %v497 = vsub.f32 %v495, %v496
    %v498 = vand.u32 %v497, 4294901760
    %499 = vmatpush.msra.mxu0 %v498
    %v500 = vand.u32 %v43, 4294901760
    %v501 = vsub.f32 %v43, %v500
    %v502 = vand.u32 %v501, 4294901760
    %v503 = vsub.f32 %v501, %v502
    %v504 = vand.u32 %v503, 4294901760
    %505 = vmatpush.msra.mxu0 %v504
    %v506 = vand.u32 %v42, 4294901760
    %v507 = vsub.f32 %v42, %v506
    %v508 = vand.u32 %v507, 4294901760
    %v509 = vsub.f32 %v507, %v508
    %v510 = vand.u32 %v509, 4294901760
    %511 = vmatpush.msra.mxu0 %v510
    %v512 = vand.u32 %v41, 4294901760
    %v513 = vsub.f32 %v41, %v512
    %v514 = vand.u32 %v513, 4294901760
    %v515 = vsub.f32 %v513, %v514
    %v516 = vand.u32 %v515, 4294901760
    %517 = vmatpush.msra.mxu0 %v516
    %v518 = vand.u32 %v40, 4294901760
    %v519 = vsub.f32 %v40, %v518
    %v520 = vand.u32 %v519, 4294901760
    %v521 = vsub.f32 %v519, %v520
    %v522 = vand.u32 %v521, 4294901760
    %523 = vmatpush.msra.mxu0 %v522
    %v524 = vand.u32 %v39, 4294901760
    %v525 = vsub.f32 %v39, %v524
    %v526 = vand.u32 %v525, 4294901760
    %v527 = vsub.f32 %v525, %v526
    %v528 = vand.u32 %v527, 4294901760
    %529 = vmatpush.msra.mxu0 %v528
    %v530 = vand.u32 %v38, 4294901760
    %v531 = vsub.f32 %v38, %v530
    %v532 = vand.u32 %v531, 4294901760
    %v533 = vsub.f32 %v531, %v532
    %v534 = vand.u32 %v533, 4294901760
    %535 = vmatpush.msra.mxu0 %v534
    %v536 = vand.u32 %v37, 4294901760
    %v537 = vsub.f32 %v37, %v536
    %v538 = vand.u32 %v537, 4294901760
    %v539 = vsub.f32 %v537, %v538
    %v540 = vand.u32 %v539, 4294901760
    %541 = vmatpush.msra.mxu0 %v540
    %v542 = vand.u32 %v36, 4294901760
    %v543 = vsub.f32 %v36, %v542
    %v544 = vand.u32 %v543, 4294901760
    %v545 = vsub.f32 %v543, %v544
    %v546 = vand.u32 %v545, 4294901760
    %547 = vmatpush.msra.mxu0 %v546
    %v548 = vand.u32 %v35, 4294901760
    %v549 = vsub.f32 %v35, %v548
    %v550 = vand.u32 %v549, 4294901760
    %v551 = vsub.f32 %v549, %v550
    %v552 = vand.u32 %v551, 4294901760
    %553 = vmatpush.msra.mxu0 %v552
    %v554 = vand.u32 %v34, 4294901760
    %v555 = vsub.f32 %v34, %v554
    %v556 = vand.u32 %v555, 4294901760
    %v557 = vsub.f32 %v555, %v556
    %v558 = vand.u32 %v557, 4294901760
    %559 = vmatpush.msra.mxu0 %v558
    %v560 = vand.u32 %v33, 4294901760
    %v561 = vsub.f32 %v33, %v560
    %v562 = vand.u32 %v561, 4294901760
    %v563 = vsub.f32 %v561, %v562
    %v564 = vand.u32 %v563, 4294901760
    %565 = vmatpush.msra.mxu0 %v564
    %v566 = vand.u32 %v32, 4294901760
    %v567 = vsub.f32 %v32, %v566
    %v568 = vand.u32 %v567, 4294901760
    %v569 = vsub.f32 %v567, %v568
    %v570 = vand.u32 %v569, 4294901760
    %571 = vmatpush.msra.mxu0 %v570
    %v572 = vand.u32 %v31, 4294901760
    %v573 = vsub.f32 %v31, %v572
    %v574 = vand.u32 %v573, 4294901760
    %v575 = vsub.f32 %v573, %v574
    %v576 = vand.u32 %v575, 4294901760
    %577 = vmatpush.msra.mxu0 %v576
    %v578 = vand.u32 %v30, 4294901760
    %v579 = vsub.f32 %v30, %v578
    %v580 = vand.u32 %v579, 4294901760
    %v581 = vsub.f32 %v579, %v580
    %v582 = vand.u32 %v581, 4294901760
    %583 = vmatpush.msra.mxu0 %v582
    %v584 = vand.u32 %v64, 4294901760
    %585 = vmatmul.f32.gmra.mxu0 %v584
    %v586 = vpop.f32.mrf.mxu0
    %v587 = vadd.f32 %v478, %v586
    %v588 = vand.u32 %v66, 4294901760
    %589 = vmatmul.f32.gmra.mxu0 %v588
    %v590 = vpop.f32.mrf.mxu0
    %v591 = vadd.f32 %v486, %v590
    %592 = vdwg.mxu0
    %v593 = vand.u32 %v45, 4294901760
    %v594 = vsub.f32 %v45, %v593
    %595 = vmatpush.msra.mxu0 %v594
    %v596 = vand.u32 %v44, 4294901760
    %v597 = vsub.f32 %v44, %v596
    %598 = vmatpush.msra.mxu0 %v597
    %v599 = vand.u32 %v43, 4294901760
    %v600 = vsub.f32 %v43, %v599
    %601 = vmatpush.msra.mxu0 %v600
    %v602 = vand.u32 %v42, 4294901760
    %v603 = vsub.f32 %v42, %v602
    %604 = vmatpush.msra.mxu0 %v603
    %v605 = vand.u32 %v41, 4294901760
    %v606 = vsub.f32 %v41, %v605
    %607 = vmatpush.msra.mxu0 %v606
    %v608 = vand.u32 %v40, 4294901760
    %v609 = vsub.f32 %v40, %v608
    %610 = vmatpush.msra.mxu0 %v609
    %v611 = vand.u32 %v39, 4294901760
    %v612 = vsub.f32 %v39, %v611
    %613 = vmatpush.msra.mxu0 %v612
    %v614 = vand.u32 %v38, 4294901760
    %v615 = vsub.f32 %v38, %v614
    %616 = vmatpush.msra.mxu0 %v615
    %v617 = vand.u32 %v37, 4294901760
    %v618 = vsub.f32 %v37, %v617
    %619 = vmatpush.msra.mxu0 %v618
    %v620 = vand.u32 %v36, 4294901760
    %v621 = vsub.f32 %v36, %v620
    %622 = vmatpush.msra.mxu0 %v621
    %v623 = vand.u32 %v35, 4294901760
    %v624 = vsub.f32 %v35, %v623
    %625 = vmatpush.msra.mxu0 %v624
    %v626 = vand.u32 %v34, 4294901760
    %v627 = vsub.f32 %v34, %v626
    %628 = vmatpush.msra.mxu0 %v627
    %v629 = vand.u32 %v33, 4294901760
    %v630 = vsub.f32 %v33, %v629
    %631 = vmatpush.msra.mxu0 %v630
    %v632 = vand.u32 %v32, 4294901760
    %v633 = vsub.f32 %v32, %v632
    %634 = vmatpush.msra.mxu0 %v633
    %v635 = vand.u32 %v31, 4294901760
    %v636 = vsub.f32 %v31, %v635
    %637 = vmatpush.msra.mxu0 %v636
    %v638 = vand.u32 %v30, 4294901760
    %v639 = vsub.f32 %v30, %v638
    %640 = vmatpush.msra.mxu0 %v639
    %v641 = vand.u32 %v64, 4294901760
    %v642 = vsub.f32 %v64, %v641
    %643 = vmatmul.f32.gmra.mxu0 %v642
    %v644 = vpop.f32.mrf.mxu0
    %v645 = vadd.f32 %v587, %v644
    %v646 = vand.u32 %v66, 4294901760
    %v647 = vsub.f32 %v66, %v646
    %648 = vmatmul.f32.gmra.mxu0 %v647
    %v649 = vpop.f32.mrf.mxu0
    %v650 = vadd.f32 %v591, %v649
    %651 = vdwg.mxu0
    %v652 = vand.u32 %v45, 4294901760
    %653 = vmatpush.msra.mxu0 %v652
    %v654 = vand.u32 %v44, 4294901760
    %655 = vmatpush.msra.mxu0 %v654
    %v656 = vand.u32 %v43, 4294901760
    %657 = vmatpush.msra.mxu0 %v656
    %v658 = vand.u32 %v42, 4294901760
    %659 = vmatpush.msra.mxu0 %v658
    %v660 = vand.u32 %v41, 4294901760
    %661 = vmatpush.msra.mxu0 %v660
    %v662 = vand.u32 %v40, 4294901760
    %663 = vmatpush.msra.mxu0 %v662
    %v664 = vand.u32 %v39, 4294901760
    %665 = vmatpush.msra.mxu0 %v664
    %v666 = vand.u32 %v38, 4294901760
    %667 = vmatpush.msra.mxu0 %v666
    %v668 = vand.u32 %v37, 4294901760
    %669 = vmatpush.msra.mxu0 %v668
    %v670 = vand.u32 %v36, 4294901760
    %671 = vmatpush.msra.mxu0 %v670
    %v672 = vand.u32 %v35, 4294901760
    %673 = vmatpush.msra.mxu0 %v672
    %v674 = vand.u32 %v34, 4294901760
    %675 = vmatpush.msra.mxu0 %v674
    %v676 = vand.u32 %v33, 4294901760
    %677 = vmatpush.msra.mxu0 %v676
    %v678 = vand.u32 %v32, 4294901760
    %679 = vmatpush.msra.mxu0 %v678
    %v680 = vand.u32 %v31, 4294901760
    %681 = vmatpush.msra.mxu0 %v680
    %v682 = vand.u32 %v30, 4294901760
    %683 = vmatpush.msra.mxu0 %v682
    %v684 = vand.u32 %v64, 4294901760
    %v685 = vsub.f32 %v64, %v684
    %v686 = vand.u32 %v685, 4294901760
    %687 = vmatmul.f32.gmra.mxu0 %v686
    %v688 = vpop.f32.mrf.mxu0
    %v689 = vadd.f32 %v645, %v688
    %v690 = vand.u32 %v66, 4294901760
    %v691 = vsub.f32 %v66, %v690
    %v692 = vand.u32 %v691, 4294901760
    %693 = vmatmul.f32.gmra.mxu0 %v692
    %v694 = vpop.f32.mrf.mxu0
    %v695 = vadd.f32 %v650, %v694
    %696 = vdwg.mxu0
    %v697 = vand.u32 %v45, 4294901760
    %v698 = vsub.f32 %v45, %v697
    %v699 = vand.u32 %v698, 4294901760
    %700 = vmatpush.msra.mxu0 %v699
    %v701 = vand.u32 %v44, 4294901760
    %v702 = vsub.f32 %v44, %v701
    %v703 = vand.u32 %v702, 4294901760
    %704 = vmatpush.msra.mxu0 %v703
    %v705 = vand.u32 %v43, 4294901760
    %v706 = vsub.f32 %v43, %v705
    %v707 = vand.u32 %v706, 4294901760
    %708 = vmatpush.msra.mxu0 %v707
    %v709 = vand.u32 %v42, 4294901760
    %v710 = vsub.f32 %v42, %v709
    %v711 = vand.u32 %v710, 4294901760
    %712 = vmatpush.msra.mxu0 %v711
    %v713 = vand.u32 %v41, 4294901760
    %v714 = vsub.f32 %v41, %v713
    %v715 = vand.u32 %v714, 4294901760
    %716 = vmatpush.msra.mxu0 %v715
    %v717 = vand.u32 %v40, 4294901760
    %v718 = vsub.f32 %v40, %v717
    %v719 = vand.u32 %v718, 4294901760
    %720 = vmatpush.msra.mxu0 %v719
    %v721 = vand.u32 %v39, 4294901760
    %v722 = vsub.f32 %v39, %v721
    %v723 = vand.u32 %v722, 4294901760
    %724 = vmatpush.msra.mxu0 %v723
    %v725 = vand.u32 %v38, 4294901760
    %v726 = vsub.f32 %v38, %v725
    %v727 = vand.u32 %v726, 4294901760
    %728 = vmatpush.msra.mxu0 %v727
    %v729 = vand.u32 %v37, 4294901760
    %v730 = vsub.f32 %v37, %v729
    %v731 = vand.u32 %v730, 4294901760
    %732 = vmatpush.msra.mxu0 %v731
    %v733 = vand.u32 %v36, 4294901760
    %v734 = vsub.f32 %v36, %v733
    %v735 = vand.u32 %v734, 4294901760
    %736 = vmatpush.msra.mxu0 %v735
    %v737 = vand.u32 %v35, 4294901760
    %v738 = vsub.f32 %v35, %v737
    %v739 = vand.u32 %v738, 4294901760
    %740 = vmatpush.msra.mxu0 %v739
    %v741 = vand.u32 %v34, 4294901760
    %v742 = vsub.f32 %v34, %v741
    %v743 = vand.u32 %v742, 4294901760
    %744 = vmatpush.msra.mxu0 %v743
    %v745 = vand.u32 %v33, 4294901760
    %v746 = vsub.f32 %v33, %v745
    %v747 = vand.u32 %v746, 4294901760
    %748 = vmatpush.msra.mxu0 %v747
    %v749 = vand.u32 %v32, 4294901760
    %v750 = vsub.f32 %v32, %v749
    %v751 = vand.u32 %v750, 4294901760
    %752 = vmatpush.msra.mxu0 %v751
    %v753 = vand.u32 %v31, 4294901760
    %v754 = vsub.f32 %v31, %v753
    %v755 = vand.u32 %v754, 4294901760
    %756 = vmatpush.msra.mxu0 %v755
    %v757 = vand.u32 %v30, 4294901760
    %v758 = vsub.f32 %v30, %v757
    %v759 = vand.u32 %v758, 4294901760
    %760 = vmatpush.msra.mxu0 %v759
    %v761 = vand.u32 %v64, 4294901760
    %762 = vmatmul.f32.gmra.mxu0 %v761
    %v763 = vpop.f32.mrf.mxu0
    %v764 = vadd.f32 %v689, %v763
    %v765 = vand.u32 %v66, 4294901760
    %766 = vmatmul.f32.gmra.mxu0 %v765
    %v767 = vpop.f32.mrf.mxu0
    %v768 = vadd.f32 %v695, %v767
    %769 = vdwg.mxu0
    %v770 = vand.u32 %v45, 4294901760
    %771 = vmatpush.msra.mxu0 %v770
    %v772 = vand.u32 %v44, 4294901760
    %773 = vmatpush.msra.mxu0 %v772
    %v774 = vand.u32 %v43, 4294901760
    %775 = vmatpush.msra.mxu0 %v774
    %v776 = vand.u32 %v42, 4294901760
    %777 = vmatpush.msra.mxu0 %v776
    %v778 = vand.u32 %v41, 4294901760
    %779 = vmatpush.msra.mxu0 %v778
    %v780 = vand.u32 %v40, 4294901760
    %781 = vmatpush.msra.mxu0 %v780
    %v782 = vand.u32 %v39, 4294901760
    %783 = vmatpush.msra.mxu0 %v782
    %v784 = vand.u32 %v38, 4294901760
    %785 = vmatpush.msra.mxu0 %v784
    %v786 = vand.u32 %v37, 4294901760
    %787 = vmatpush.msra.mxu0 %v786
    %v788 = vand.u32 %v36, 4294901760
    %789 = vmatpush.msra.mxu0 %v788
    %v790 = vand.u32 %v35, 4294901760
    %791 = vmatpush.msra.mxu0 %v790
    %v792 = vand.u32 %v34, 4294901760
    %793 = vmatpush.msra.mxu0 %v792
    %v794 = vand.u32 %v33, 4294901760
    %795 = vmatpush.msra.mxu0 %v794
    %v796 = vand.u32 %v32, 4294901760
    %797 = vmatpush.msra.mxu0 %v796
    %v798 = vand.u32 %v31, 4294901760
    %799 = vmatpush.msra.mxu0 %v798
    %v800 = vand.u32 %v30, 4294901760
    %801 = vmatpush.msra.mxu0 %v800
    %v802 = vand.u32 %v64, 4294901760
    %803 = vmatmul.f32.gmra.mxu0 %v802
    %v804 = vpop.f32.mrf.mxu0
    %v805 = vadd.f32 %v764, %v804
    %v806 = vand.u32 %v66, 4294901760
    %807 = vmatmul.f32.gmra.mxu0 %v806
    %v808 = vpop.f32.mrf.mxu0
    %v809 = vadd.f32 %v768, %v808
    %810 = vdwg.mxu0
    %v811 = vmul.f32 %v805, 5.656854
    %v812 = vmul.f32 %v809, 5.656854
    %vm813 = vcmask 261120
    %814 = vst.msk [vmem:[#allocation2] sm:$0xff] %vm813, %v811
    %815 = vst.msk [vmem:[#allocation2 + $0x8] sm:$0xff] %vm813, %v812
    // Predicated region
    $region10: #{tpu_custom_call.1} parent=1 // pred_check
      _
    $region11: #{tpu_custom_call.1} parent=1 // pred_check_branch
      %817 = sbr.rel (0) target = $region13
    $region12: #{tpu_custom_call.1} parent=1 // pred_region
      %819 = vsyncadd [#allocation3], 0
      %s820 = sshll.u32 [#allocation2], 4
      %s821 = int_to_ptr.vmem [resolvable:$true] %s820
      %s822 = sshll.u32 %s2, 4
      %s823 = int_to_ptr.hbm [resolvable:$true] %s822
      %828 = dma.vmem_to_hbm [thread:$0]  %s821, 256, %s823, [#allocation3], 128, 128, 8
    $region13: #{tpu_custom_call.1} parent=1 // pred_fallthru
      _
    // Predicated region
    $region14: #{tpu_custom_call.1} parent=1 // pred_check
      _
    $region15: #{tpu_custom_call.1} parent=1 // pred_check_branch
      %830 = sbr.rel (0) target = $region17
    $region16: #{tpu_custom_call.1} parent=1 // pred_region
      %832 = dma.done [#allocation3], 256
    $region17: #{tpu_custom_call.1} parent=1 // pred_fallthru
      _
    %833 = vsyncpa [#allocation3], 1

</llo_original>
